<compile_context>
chip_gen: v5e
topology: v5e:2x2
jax: 0.10.0
libtpu: 0.0.40
codegen_flags: <defaults>
</compile_context>

<pallas_src>
import functools

import jax
import jax.numpy as jnp
from jax.experimental import pallas as pl
from jax.experimental.pallas import tpu as pltpu

LANE = 128
SUBLANE = 8


def _round_up(x, m):
    return (x + m - 1) // m * m


def encoder_client_kernel(
    value_ref,                                 # (TS, Dp) f32, pad lanes are zero
    wvo_ref, bvo_ref,                          # fused attention proj: (Dp,Dp) bf16, (1,Dp) f32
    gamma_ref, beta_ref,                       # LayerNorm affine (1, Dp) f32 (zero in pad lanes)
    w1_ref, b1_ref, w2_ref, b2_ref,            # feed_forward[0] params (bf16 weights, f32 biases)
    ff_out_ref, norm1_out_ref,                 # outputs (TS, Dp) each, lane-dense
    *, d_model,
):
    value = value_ref[...]

    # ---- MultiHeadAttention (length-1 key axis => softmax == 1) -------------
    # attn_out = value @ (Wv @ Wo) + (bv @ Wo + bo)
    attn = jnp.dot(value.astype(jnp.bfloat16), wvo_ref[...],
                   preferred_element_type=jnp.float32) + bvo_ref[...]

    # residual connection with `value` in full f32 (pad lanes stay exactly zero)
    resid = attn + value

    # ---- LayerNorm over the true d_model lanes, Dropout(0.5) = identity -----
    inv_d = 1.0 / d_model
    mean = jnp.sum(resid, axis=-1, keepdims=True) * inv_d
    lane = jax.lax.broadcasted_iota(jnp.int32, (1, resid.shape[-1]), 1)
    centered = jnp.where(lane < d_model, resid - mean, 0.0)
    var = jnp.sum(centered * centered, axis=-1, keepdims=True) * inv_d
    norm1 = centered * jax.lax.rsqrt(var + 1e-5) * gamma_ref[...] + beta_ref[...]
    norm1_out_ref[...] = norm1                 # 128-lane unmasked store

    # ---- feed_forward[0]: Linear -> ReLU -> Dropout -> Linear -> ReLU -> Dropout
    h = jnp.dot(norm1.astype(jnp.bfloat16), w1_ref[...],
                preferred_element_type=jnp.float32) + b1_ref[...]
    h = jnp.maximum(h, 0.0)
    ff = jnp.dot(h.astype(jnp.bfloat16), w2_ref[...],
                 preferred_element_type=jnp.float32) + b2_ref[...]
    ff = jnp.maximum(ff, 0.0)
    ff_out_ref[...] = ff                       # 128-lane unmasked store


def transformer_encoder_client(key_in, query_in, value_in, params, *, tile_s=512):
    """Returns [feed_fwd_out, norm1_out] like the PyTorch module (eval mode).

    key_in / query_in are accepted for API parity but are mathematically dead
    (length-1 key axis => softmax == 1), so they are never DMA'd.
    """
    del key_in, query_in
    S, D = value_in.shape
    D1 = params["w2"].shape[1]
    Dp = _round_up(max(D, D1), LANE)           # lane-dense padded width

    # Fold the attention V / output projections (exact for length-1 key axis).
    wvo = params["wv"] @ params["wo"]                       # (D, D)
    bvo = params["bv"] @ params["wo"] + params["bo"]        # (1, D)

    def pad2(a, rows, cols):
        return jnp.pad(a, ((0, rows - a.shape[0]), (0, cols - a.shape[1])))

    wvo_p = pad2(wvo, Dp, Dp).astype(jnp.bfloat16)
    w1_p = pad2(params["w1"], Dp, Dp).astype(jnp.bfloat16)
    w2_p = pad2(params["w2"], Dp, Dp).astype(jnp.bfloat16)
    bvo_p = pad2(bvo, 1, Dp)
    b1_p = pad2(params["b1"], 1, Dp)
    b2_p = pad2(params["b2"], 1, Dp)
    gamma_p = pad2(params["gamma"], 1, Dp)
    beta_p = pad2(params["beta"], 1, Dp)

    # Tile the sequence axis (sublane aligned); pad rows are zeros and sliced off.
    ts = min(tile_s, _round_up(S, SUBLANE))
    Sp = _round_up(S, ts)
    value_p = jnp.pad(value_in, ((0, Sp - S), (0, Dp - D)))

    row_spec = pl.BlockSpec((ts, Dp), lambda i: (i, 0))
    pinned = lambda shape: pl.BlockSpec(shape, lambda i: (0, 0))  # VMEM-resident across steps

    ff_out, norm1_out = pl.pallas_call(
        functools.partial(encoder_client_kernel, d_model=D),
        out_shape=(
            jax.ShapeDtypeStruct((Sp, Dp), jnp.float32),
            jax.ShapeDtypeStruct((Sp, Dp), jnp.float32),
        ),
        grid=(Sp // ts,),
        in_specs=[
            row_spec,                                   # value tiles (streamed)
            pinned((Dp, Dp)), pinned((1, Dp)),          # Wvo, bvo
            pinned((1, Dp)), pinned((1, Dp)),           # gamma, beta
            pinned((Dp, Dp)), pinned((1, Dp)),          # w1, b1
            pinned((Dp, Dp)), pinned((1, Dp)),          # w2, b2
        ],
        out_specs=(row_spec, row_spec),
        compiler_params=pltpu.CompilerParams(
            dimension_semantics=("parallel",),          # megacore / v7x 2-TC sharding
            vmem_limit_bytes=32 * 1024 * 1024,          # safe within v7x's 64 MiB VMEM
        ),
    )(value_p, wvo_p, bvo_p, gamma_p, beta_p, w1_p, b1_p, w2_p, b2_p)

    return [ff_out[:S, :D1], norm1_out[:S, :D]]


def init_params(rng, embed_dim, expansion_factor=0.8):
    """Deterministic parameter init (torch nn.Linear-style uniform bounds).

    Weights are stored (in_features, out_features) so the kernel does x @ W + b.
    """
    d1 = round(embed_dim * expansion_factor)   # matches the module's Python round()

    def linear(key, fan_in, fan_out):
        kw, kb = jax.random.split(key)
        bound = 1.0 / jnp.sqrt(fan_in)
        w = jax.random.uniform(kw, (fan_in, fan_out), jnp.float32, -bound, bound)
        b = jax.random.uniform(kb, (1, fan_out), jnp.float32, -bound, bound)
        return w, b

    keys = jax.random.split(rng, 6)
    wq, bq = linear(keys[0], embed_dim, embed_dim)   # present in the module,
    wk, bk = linear(keys[1], embed_dim, embed_dim)   # but dead for 2-D inputs
    wv, bv = linear(keys[2], embed_dim, embed_dim)
    wo, bo = linear(keys[3], embed_dim, embed_dim)
    w1, b1 = linear(keys[4], embed_dim, embed_dim)
    w2, b2 = linear(keys[5], embed_dim, d1)
    gamma = jnp.ones((1, embed_dim), jnp.float32)
    beta = jnp.zeros((1, embed_dim), jnp.float32)
    return dict(wq=wq, bq=bq, wk=wk, bk=bk, wv=wv, bv=bv, wo=wo, bo=bo,
                gamma=gamma, beta=beta, w1=w1, b1=b1, w2=w2, b2=b2)


def reference_forward(value_in, params):
    """Pure-JAX f32 reference of the PyTorch module (eval mode, 2-D inputs)."""
    attn = (value_in @ params["wv"] + params["bv"]) @ params["wo"] + params["bo"]
    resid = attn + value_in
    mean = jnp.mean(resid, axis=-1, keepdims=True)
    var = jnp.mean((resid - mean) ** 2, axis=-1, keepdims=True)
    norm1 = (resid - mean) * jax.lax.rsqrt(var + 1e-5) * params["gamma"] + params["beta"]
    h = jnp.maximum(norm1 @ params["w1"] + params["b1"], 0.0)
    ff = jnp.maximum(h @ params["w2"] + params["b2"], 0.0)
    return ff, norm1


if __name__ == "__main__":
    # Small shapes consistent with the module: 2-D (seq, embed) inputs.
    S = 8            # sequence length (acts as the "batch" axis inside MHA)
    D = 32           # embed_dim (num_heads=16 divides it; heads don't alter the math here)
    # TODO(synk): split_layer > 0 would append more feed-forward blocks; the
    # default ctor (split_layer=0) uses exactly one, which is what we implement.
    # TODO(synk): training-mode Dropout(0.5) is not implemented (eval = identity).
    # NOTE: for many small sequences, batch them into one call (grid over rows)
    # instead of calling this wrapper per sequence.

    root = jax.random.PRNGKey(0)
    k_key, k_query, k_value, k_params = jax.random.split(root, 4)

    key_in = jax.random.normal(k_key, (S, D), jnp.float32)
    query_in = jax.random.normal(k_query, (S, D), jnp.float32)
    value_in = jax.random.normal(k_value, (S, D), jnp.float32)

    params = init_params(k_params, D, expansion_factor=0.8)
    D1 = params["w2"].shape[1]

    ff_out, norm1_out = transformer_encoder_client(key_in, query_in, value_in, params)
    jax.block_until_ready((ff_out, norm1_out))

    assert ff_out.shape == (S, D1)
    assert norm1_out.shape == (S, D)

    # Sanity-check against the f32 reference (loose tolerance: bf16 dot operands).
    ff_ref, norm1_ref = reference_forward(value_in, params)
    assert bool(jnp.all(jnp.isfinite(ff_out))) and bool(jnp.all(jnp.isfinite(norm1_out)))
    assert bool(jnp.max(jnp.abs(norm1_out - norm1_ref)) < 5e-2)
    assert bool(jnp.max(jnp.abs(ff_out - ff_ref)) < 5e-2)

    print("KERNEL_OK")
</pallas_src>

<mosaic_0001>
module attributes {stable_mosaic.version = 11 : i64} {
  func.func @encoder_client_kernel(%arg0: i32, %arg1: memref<8x128xf32, #tpu.memory_space<vmem>>, %arg2: memref<128x128xbf16, #tpu.memory_space<vmem>>, %arg3: memref<1x128xf32, #tpu.memory_space<vmem>>, %arg4: memref<1x128xf32, #tpu.memory_space<vmem>>, %arg5: memref<1x128xf32, #tpu.memory_space<vmem>>, %arg6: memref<128x128xbf16, #tpu.memory_space<vmem>>, %arg7: memref<1x128xf32, #tpu.memory_space<vmem>>, %arg8: memref<128x128xbf16, #tpu.memory_space<vmem>>, %arg9: memref<1x128xf32, #tpu.memory_space<vmem>>, %arg10: memref<8x128xf32, #tpu.memory_space<vmem>>, %arg11: memref<8x128xf32, #tpu.memory_space<vmem>>) attributes {dimension_semantics = [#tpu.dimension_semantics<parallel>], iteration_bounds = array<i64: 1>, scalar_prefetch = 0 : i64, scratch_operands = 0 : i64, tpu.core_type = #tpu.core_type<tc>, window_params = [{transform_indices = @transform_0, window_bounds = array<i64: 8, 128>}, {pipeline_mode = #tpu.pipeline_mode<synchronous>, transform_indices = @transform_1, window_bounds = array<i64: 128, 128>}, {pipeline_mode = #tpu.pipeline_mode<synchronous>, transform_indices = @transform_2, window_bounds = array<i64: 1, 128>}, {pipeline_mode = #tpu.pipeline_mode<synchronous>, transform_indices = @transform_3, window_bounds = array<i64: 1, 128>}, {pipeline_mode = #tpu.pipeline_mode<synchronous>, transform_indices = @transform_4, window_bounds = array<i64: 1, 128>}, {pipeline_mode = #tpu.pipeline_mode<synchronous>, transform_indices = @transform_5, window_bounds = array<i64: 128, 128>}, {pipeline_mode = #tpu.pipeline_mode<synchronous>, transform_indices = @transform_6, window_bounds = array<i64: 1, 128>}, {pipeline_mode = #tpu.pipeline_mode<synchronous>, transform_indices = @transform_7, window_bounds = array<i64: 128, 128>}, {pipeline_mode = #tpu.pipeline_mode<synchronous>, transform_indices = @transform_8, window_bounds = array<i64: 1, 128>}, {transform_indices = @transform_9, window_bounds = array<i64: 8, 128>}, {transform_indices = @transform_10, window_bounds = array<i64: 8, 128>}]} {
    %c0 = arith.constant 0 : index
    %c0_0 = arith.constant 0 : index
    %0 = vector.load %arg1[%c0, %c0_0] : memref<8x128xf32, #tpu.memory_space<vmem>>, vector<8x128xf32>
    %1 = arith.truncf %0 : vector<8x128xf32> to vector<8x128xbf16>
    %c0_1 = arith.constant 0 : index
    %c0_2 = arith.constant 0 : index
    %2 = vector.load %arg2[%c0_1, %c0_2] : memref<128x128xbf16, #tpu.memory_space<vmem>>, vector<128x128xbf16>
    %cst = arith.constant dense<0.000000e+00> : vector<8x128xf32>
    %3 = tpu.matmul %1, %2, %cst {dimension_numbers = #tpu.dot_dimension_numbers<[1], [0], [0], [1], [0, 0, 1, 1], [], []>} : vector<8x128xbf16>, vector<128x128xbf16>, vector<8x128xf32> -> vector<8x128xf32>
    %c0_3 = arith.constant 0 : index
    %c0_4 = arith.constant 0 : index
    %4 = vector.load %arg3[%c0_3, %c0_4] : memref<1x128xf32, #tpu.memory_space<vmem>>, vector<1x128xf32>
    %5 = vector.broadcast %4 : vector<1x128xf32> to vector<8x128xf32>
    %6 = arith.addf %3, %5 : vector<8x128xf32>
    %7 = arith.addf %6, %0 : vector<8x128xf32>
    %cst_5 = arith.constant dense<0.000000e+00> : vector<8xf32>
    %8 = vector.multi_reduction <add>, %7, %cst_5 [1] : vector<8x128xf32> to vector<8xf32>
    %9 = vector.shape_cast %8 : vector<8xf32> to vector<8x1xf32>
    %cst_6 = arith.constant 3.125000e-02 : f32
    %10 = vector.broadcast %cst_6 : f32 to vector<8x1xf32>
    %11 = arith.mulf %9, %10 : vector<8x1xf32>
    %12 = tpu.iota {dimensions = array<i32: 1>} : vector<1x128xi32>
    %c32_i32 = arith.constant 32 : i32
    %13 = vector.broadcast %c32_i32 : i32 to vector<1x128xi32>
    %14 = arith.cmpi slt, %12, %13 : vector<1x128xi32>
    %15 = vector.broadcast %11 : vector<8x1xf32> to vector<8x128xf32>
    %16 = arith.subf %7, %15 : vector<8x128xf32>
    %cst_7 = arith.constant 0.000000e+00 : f32
    %17 = vector.shape_cast %14 : vector<1x128xi1> to vector<1x128xi1>
    %18 = vector.broadcast %17 : vector<1x128xi1> to vector<8x128xi1>
    %19 = vector.broadcast %cst_7 : f32 to vector<8x128xf32>
    %20 = arith.select %18, %16, %19 : vector<8x128xi1>, vector<8x128xf32>
    %21 = arith.mulf %20, %20 : vector<8x128xf32>
    %cst_8 = arith.constant dense<0.000000e+00> : vector<8xf32>
    %22 = vector.multi_reduction <add>, %21, %cst_8 [1] : vector<8x128xf32> to vector<8xf32>
    %23 = vector.shape_cast %22 : vector<8xf32> to vector<8x1xf32>
    %cst_9 = arith.constant 3.125000e-02 : f32
    %24 = vector.broadcast %cst_9 : f32 to vector<8x1xf32>
    %25 = arith.mulf %23, %24 : vector<8x1xf32>
    %cst_10 = arith.constant 9.99999974E-6 : f32
    %26 = vector.broadcast %cst_10 : f32 to vector<8x1xf32>
    %27 = arith.addf %25, %26 : vector<8x1xf32>
    %28 = math.rsqrt %27 : vector<8x1xf32>
    %29 = vector.broadcast %28 : vector<8x1xf32> to vector<8x128xf32>
    %30 = arith.mulf %20, %29 : vector<8x128xf32>
    %c0_11 = arith.constant 0 : index
    %c0_12 = arith.constant 0 : index
    %31 = vector.load %arg4[%c0_11, %c0_12] : memref<1x128xf32, #tpu.memory_space<vmem>>, vector<1x128xf32>
    %32 = vector.broadcast %31 : vector<1x128xf32> to vector<8x128xf32>
    %33 = arith.mulf %30, %32 : vector<8x128xf32>
    %c0_13 = arith.constant 0 : index
    %c0_14 = arith.constant 0 : index
    %34 = vector.load %arg5[%c0_13, %c0_14] : memref<1x128xf32, #tpu.memory_space<vmem>>, vector<1x128xf32>
    %35 = vector.broadcast %34 : vector<1x128xf32> to vector<8x128xf32>
    %36 = arith.addf %33, %35 : vector<8x128xf32>
    %c0_15 = arith.constant 0 : index
    %c0_16 = arith.constant 0 : index
    %37 = vector.load %arg11[%c0_15, %c0_16] : memref<8x128xf32, #tpu.memory_space<vmem>>, vector<8x128xf32>
    tpu.vector_store %arg11[%c0_15, %c0_16], %36 {strides = array<i32>} : memref<8x128xf32, #tpu.memory_space<vmem>>, vector<8x128xf32>,
    %38 = arith.truncf %36 : vector<8x128xf32> to vector<8x128xbf16>
    %c0_17 = arith.constant 0 : index
    %c0_18 = arith.constant 0 : index
    %39 = vector.load %arg6[%c0_17, %c0_18] : memref<128x128xbf16, #tpu.memory_space<vmem>>, vector<128x128xbf16>
    %cst_19 = arith.constant dense<0.000000e+00> : vector<8x128xf32>
    %40 = tpu.matmul %38, %39, %cst_19 {dimension_numbers = #tpu.dot_dimension_numbers<[1], [0], [0], [1], [0, 0, 1, 1], [], []>} : vector<8x128xbf16>, vector<128x128xbf16>, vector<8x128xf32> -> vector<8x128xf32>
    %c0_20 = arith.constant 0 : index
    %c0_21 = arith.constant 0 : index
    %41 = vector.load %arg7[%c0_20, %c0_21] : memref<1x128xf32, #tpu.memory_space<vmem>>, vector<1x128xf32>
    %42 = vector.broadcast %41 : vector<1x128xf32> to vector<8x128xf32>
    %43 = arith.addf %40, %42 : vector<8x128xf32>
    %cst_22 = arith.constant 0.000000e+00 : f32
    %44 = vector.broadcast %cst_22 : f32 to vector<8x128xf32>
    %45 = arith.maximumf %43, %44 : vector<8x128xf32>
    %46 = arith.truncf %45 : vector<8x128xf32> to vector<8x128xbf16>
    %c0_23 = arith.constant 0 : index
    %c0_24 = arith.constant 0 : index
    %47 = vector.load %arg8[%c0_23, %c0_24] : memref<128x128xbf16, #tpu.memory_space<vmem>>, vector<128x128xbf16>
    %cst_25 = arith.constant dense<0.000000e+00> : vector<8x128xf32>
    %48 = tpu.matmul %46, %47, %cst_25 {dimension_numbers = #tpu.dot_dimension_numbers<[1], [0], [0], [1], [0, 0, 1, 1], [], []>} : vector<8x128xbf16>, vector<128x128xbf16>, vector<8x128xf32> -> vector<8x128xf32>
    %c0_26 = arith.constant 0 : index
    %c0_27 = arith.constant 0 : index
    %49 = vector.load %arg9[%c0_26, %c0_27] : memref<1x128xf32, #tpu.memory_space<vmem>>, vector<1x128xf32>
    %50 = vector.broadcast %49 : vector<1x128xf32> to vector<8x128xf32>
    %51 = arith.addf %48, %50 : vector<8x128xf32>
    %cst_28 = arith.constant 0.000000e+00 : f32
    %52 = vector.broadcast %cst_28 : f32 to vector<8x128xf32>
    %53 = arith.maximumf %51, %52 : vector<8x128xf32>
    %c0_29 = arith.constant 0 : index
    %c0_30 = arith.constant 0 : index
    %54 = vector.load %arg10[%c0_29, %c0_30] : memref<8x128xf32, #tpu.memory_space<vmem>>, vector<8x128xf32>
    tpu.vector_store %arg10[%c0_29, %c0_30], %53 {strides = array<i32>} : memref<8x128xf32, #tpu.memory_space<vmem>>, vector<8x128xf32>,
    return
  }
  func.func @transform_0(%arg0: i32) -> (i32, i32) {
    %c0_i32 = arith.constant 0 : i32
    %c0_i32_0 = arith.constant 0 : i32
    return %arg0, %c0_i32 : i32, i32
  }
  func.func @transform_1(%arg0: i32) -> (i32, i32) {
    %c0_i32 = arith.constant 0 : i32
    %c0_i32_0 = arith.constant 0 : i32
    %c0_i32_1 = arith.constant 0 : i32
    return %c0_i32, %c0_i32_0 : i32, i32
  }
  func.func @transform_2(%arg0: i32) -> (i32, i32) {
    %c0_i32 = arith.constant 0 : i32
    %c0_i32_0 = arith.constant 0 : i32
    %c0_i32_1 = arith.constant 0 : i32
    return %c0_i32, %c0_i32_0 : i32, i32
  }
  func.func @transform_3(%arg0: i32) -> (i32, i32) {
    %c0_i32 = arith.constant 0 : i32
    %c0_i32_0 = arith.constant 0 : i32
    %c0_i32_1 = arith.constant 0 : i32
    return %c0_i32, %c0_i32_0 : i32, i32
  }
  func.func @transform_4(%arg0: i32) -> (i32, i32) {
    %c0_i32 = arith.constant 0 : i32
    %c0_i32_0 = arith.constant 0 : i32
    %c0_i32_1 = arith.constant 0 : i32
    return %c0_i32, %c0_i32_0 : i32, i32
  }
  func.func @transform_5(%arg0: i32) -> (i32, i32) {
    %c0_i32 = arith.constant 0 : i32
    %c0_i32_0 = arith.constant 0 : i32
    %c0_i32_1 = arith.constant 0 : i32
    return %c0_i32, %c0_i32_0 : i32, i32
  }
  func.func @transform_6(%arg0: i32) -> (i32, i32) {
    %c0_i32 = arith.constant 0 : i32
    %c0_i32_0 = arith.constant 0 : i32
    %c0_i32_1 = arith.constant 0 : i32
    return %c0_i32, %c0_i32_0 : i32, i32
  }
  func.func @transform_7(%arg0: i32) -> (i32, i32) {
    %c0_i32 = arith.constant 0 : i32
    %c0_i32_0 = arith.constant 0 : i32
    %c0_i32_1 = arith.constant 0 : i32
    return %c0_i32, %c0_i32_0 : i32, i32
  }
  func.func @transform_8(%arg0: i32) -> (i32, i32) {
    %c0_i32 = arith.constant 0 : i32
    %c0_i32_0 = arith.constant 0 : i32
    %c0_i32_1 = arith.constant 0 : i32
    return %c0_i32, %c0_i32_0 : i32, i32
  }
  func.func @transform_9(%arg0: i32) -> (i32, i32) {
    %c0_i32 = arith.constant 0 : i32
    %c0_i32_0 = arith.constant 0 : i32
    return %arg0, %c0_i32 : i32, i32
  }
  func.func @transform_10(%arg0: i32) -> (i32, i32) {
    %c0_i32 = arith.constant 0 : i32
    %c0_i32_0 = arith.constant 0 : i32
    return %arg0, %c0_i32 : i32, i32
  }
}

</mosaic_0001>

<llo_original>
// kernel: tpu_custom_call.1
$region0: #{tpu_custom_call.1}
  #allocation0 [shape = 'u32[]', space=smem, size = 0x4, offset = 0x4, fixed_abs, tag = 'smem constant byte address 0x4 - core index']
  #allocation1 [shape = 'u32[72,128]{1,0:T(1,128)}', space=vmem, size = 0x9000, scoped, tag = 'internal scratch']
  %s0 = inlined_call_operand.hbm [shape: f32[8,128], index: 0, kind: input, shape index: {}]
  %s1 = inlined_call_operand.hbm [shape: bf16[128,128], index: 1, kind: input, shape index: {}]
  %s2 = inlined_call_operand.vmem [shape: f32[1,128], index: 2, kind: input, shape index: {}]
  %s3 = inlined_call_operand.vmem [shape: f32[1,128], index: 3, kind: input, shape index: {}]
  %s4 = inlined_call_operand.vmem [shape: f32[1,128], index: 4, kind: input, shape index: {}]
  %s5 = inlined_call_operand.hbm [shape: bf16[128,128], index: 5, kind: input, shape index: {}]
  %s6 = inlined_call_operand.vmem [shape: f32[1,128], index: 6, kind: input, shape index: {}]
  %s7 = inlined_call_operand.hbm [shape: bf16[128,128], index: 7, kind: input, shape index: {}]
  %s8 = inlined_call_operand.vmem [shape: f32[1,128], index: 8, kind: input, shape index: {}]
  %s9 = inlined_call_operand.hbm [shape: f32[8,128], index: 9, kind: output, shape index: {0}]
  %s10 = inlined_call_operand.hbm [shape: f32[8,128], index: 10, kind: output, shape index: {1}]
  %11 = xla_tuple %s9, %s10
  %s12 = sld [smem:[#allocation0]]
  $region70: #{tpu_custom_call.1} parent=0
    _
  %s14 = ssub.s32 1, %s12
  %s15 = scalar_select 0, %s14, %s12
  $region1: #{tpu_custom_call.1} parent=0
    #allocation2 [shape = 'u8[4096]{0}', space=vmem, size = 0x1000, scoped, tag = 'input window, operand 0, single buffered']
    #allocation3 [shape = 's32[1]{0}', space=sflag, size = 0x4, scoped, tag = 'scoped memory for tpu_custom_call.1']
    #allocation4 [shape = 's32[1]{0}', space=sflag, size = 0x4, scoped, tag = 'scoped memory for tpu_custom_call.1']
    #allocation5 [shape = 'u8[32768]{0}', space=vmem, size = 0x8000, scoped, tag = 'input window, operand 1, single buffered']
    #allocation6 [shape = 's32[1]{0}', space=sflag, size = 0x4, scoped, tag = 'scoped memory for tpu_custom_call.1']
    #allocation7 [shape = 'u8[32768]{0}', space=vmem, size = 0x8000, scoped, tag = 'input window, operand 5, single buffered']
    #allocation8 [shape = 'u8[32768]{0}', space=vmem, size = 0x8000, scoped, tag = 'input window, operand 7, single buffered']
    #allocation9 [shape = 's32[1]{0}', space=sflag, size = 0x4, scoped, tag = 'scoped memory for tpu_custom_call.1']
    #allocation10 [shape = 'u8[4096]{0}', space=vmem, size = 0x1000, scoped, tag = 'output window, operand 0, single buffered']
    #allocation11 [shape = 'u8[4096]{0}', space=vmem, size = 0x1000, scoped, tag = 'output window, operand 1, single buffered']
    #allocation12 [shape = 's32[1]{0}', space=sflag, size = 0x4, scoped, tag = 'scoped memory for tpu_custom_call.1']
    %16 = vsyncpa [#allocation3], 0
    %17 = vsyncpa [#allocation6], 0
    %18 = vsyncpa [#allocation9], 0
    %19 = vsyncpa [#allocation4], 0
    %20 = vsyncpa [#allocation12], 0
    // Predicated region
    $region2: #{tpu_custom_call.1} parent=1 // pred_check
      _
    $region3: #{tpu_custom_call.1} parent=1 // pred_check_branch
      %22 = sbr.rel (0) target = $region5
    $region4: #{tpu_custom_call.1} parent=1 // pred_region
      %24 = vsyncadd [#allocation3], 0
      %s26 = sshll.u32 %s0, 4
      %s27 = int_to_ptr.hbm [resolvable:$true] %s26
      %s28 = sshll.u32 [#allocation2], 4
      %s29 = int_to_ptr.vmem [resolvable:$true] %s28
      %31 = dma.hbm_to_vmem [thread:$0]  %s27, 128, %s29, [#allocation3]
    $region5: #{tpu_custom_call.1} parent=1 // pred_fallthru
      _
    // Predicated region
    $region6: #{tpu_custom_call.1} parent=1 // pred_check
      _
    $region7: #{tpu_custom_call.1} parent=1 // pred_check_branch
      %33 = sbr.rel (0) target = $region9
    $region8: #{tpu_custom_call.1} parent=1 // pred_region
      %35 = vsyncadd [#allocation6], 0
      %s36 = sshll.u32 %s1, 4
      %s37 = int_to_ptr.hbm [resolvable:$true] %s36
      %s38 = sshll.u32 [#allocation5], 4
      %s39 = int_to_ptr.vmem [resolvable:$true] %s38
      %44 = dma.hbm_to_vmem [thread:$0]  %s37, 1024, %s39, [#allocation6], 64, 64, 4
    $region9: #{tpu_custom_call.1} parent=1 // pred_fallthru
      _
    // Predicated region
    $region10: #{tpu_custom_call.1} parent=1 // pred_check
      _
    $region11: #{tpu_custom_call.1} parent=1 // pred_check_branch
      %46 = sbr.rel (0) target = $region13
    $region12: #{tpu_custom_call.1} parent=1 // pred_region
      _
    $region13: #{tpu_custom_call.1} parent=1 // pred_fallthru
      _
    // Predicated region
    $region14: #{tpu_custom_call.1} parent=1 // pred_check
      _
    $region15: #{tpu_custom_call.1} parent=1 // pred_check_branch
      %48 = sbr.rel (0) target = $region17
    $region16: #{tpu_custom_call.1} parent=1 // pred_region
      _
    $region17: #{tpu_custom_call.1} parent=1 // pred_fallthru
      _
    // Predicated region
    $region18: #{tpu_custom_call.1} parent=1 // pred_check
      _
    $region19: #{tpu_custom_call.1} parent=1 // pred_check_branch
      %50 = sbr.rel (0) target = $region21
    $region20: #{tpu_custom_call.1} parent=1 // pred_region
      _
    $region21: #{tpu_custom_call.1} parent=1 // pred_fallthru
      _
    // Predicated region
    $region22: #{tpu_custom_call.1} parent=1 // pred_check
      _
    $region23: #{tpu_custom_call.1} parent=1 // pred_check_branch
      %52 = sbr.rel (0) target = $region25
    $region24: #{tpu_custom_call.1} parent=1 // pred_region
      %54 = vsyncadd [#allocation6], 0
      %s55 = sshll.u32 %s5, 4
      %s56 = int_to_ptr.hbm [resolvable:$true] %s55
      %s57 = sshll.u32 [#allocation7], 4
      %s58 = int_to_ptr.vmem [resolvable:$true] %s57
      %63 = dma.hbm_to_vmem [thread:$0]  %s56, 1024, %s58, [#allocation6], 64, 64, 4
    $region25: #{tpu_custom_call.1} parent=1 // pred_fallthru
      _
    // Predicated region
    $region26: #{tpu_custom_call.1} parent=1 // pred_check
      _
    $region27: #{tpu_custom_call.1} parent=1 // pred_check_branch
      %65 = sbr.rel (0) target = $region29
    $region28: #{tpu_custom_call.1} parent=1 // pred_region
      _
    $region29: #{tpu_custom_call.1} parent=1 // pred_fallthru
      _
    // Predicated region
    $region30: #{tpu_custom_call.1} parent=1 // pred_check
      _
    $region31: #{tpu_custom_call.1} parent=1 // pred_check_branch
      %67 = sbr.rel (0) target = $region33
    $region32: #{tpu_custom_call.1} parent=1 // pred_region
      %69 = vsyncadd [#allocation9], 0
      %s70 = sshll.u32 %s7, 4
      %s71 = int_to_ptr.hbm [resolvable:$true] %s70
      %s72 = sshll.u32 [#allocation8], 4
      %s73 = int_to_ptr.vmem [resolvable:$true] %s72
      %78 = dma.hbm_to_vmem [thread:$0]  %s71, 1024, %s73, [#allocation9], 64, 64, 4
    $region33: #{tpu_custom_call.1} parent=1 // pred_fallthru
      _
    // Predicated region
    $region34: #{tpu_custom_call.1} parent=1 // pred_check
      _
    $region35: #{tpu_custom_call.1} parent=1 // pred_check_branch
      %80 = sbr.rel (0) target = $region37
    $region36: #{tpu_custom_call.1} parent=1 // pred_region
      _
    $region37: #{tpu_custom_call.1} parent=1 // pred_fallthru
      _
    // Predicated region
    $region38: #{tpu_custom_call.1} parent=1 // pred_check
      _
    $region39: #{tpu_custom_call.1} parent=1 // pred_check_branch
      %82 = sbr.rel (0) target = $region41
    $region40: #{tpu_custom_call.1} parent=1 // pred_region
      %84 = dma.done [#allocation3], 128
    $region41: #{tpu_custom_call.1} parent=1 // pred_fallthru
      _
    // Predicated region
    $region42: #{tpu_custom_call.1} parent=1 // pred_check
      _
    $region43: #{tpu_custom_call.1} parent=1 // pred_check_branch
      %86 = sbr.rel (0) target = $region45
    $region44: #{tpu_custom_call.1} parent=1 // pred_region
      %88 = dma.done [#allocation6], 1024
    $region45: #{tpu_custom_call.1} parent=1 // pred_fallthru
      _
    // Predicated region
    $region46: #{tpu_custom_call.1} parent=1 // pred_check
      _
    $region47: #{tpu_custom_call.1} parent=1 // pred_check_branch
      %90 = sbr.rel (0) target = $region49
    $region48: #{tpu_custom_call.1} parent=1 // pred_region
      %92 = dma.done [#allocation6], 1024
    $region49: #{tpu_custom_call.1} parent=1 // pred_fallthru
      _
    // Predicated region
    $region50: #{tpu_custom_call.1} parent=1 // pred_check
      _
    $region51: #{tpu_custom_call.1} parent=1 // pred_check_branch
      %94 = sbr.rel (0) target = $region53
    $region52: #{tpu_custom_call.1} parent=1 // pred_region
      %96 = dma.done [#allocation9], 1024
    $region53: #{tpu_custom_call.1} parent=1 // pred_fallthru
      _
    %v97 = vld [vmem:[#allocation2] sm:$0xff]
    %v98 = vpack.c.bf16 %v97, %v97
    %v99 = vld [vmem:[#allocation5] sm:$0xf]
    %v100 = vld [vmem:[#allocation5 + $0x4] sm:$0xf]
    %v101 = vld [vmem:[#allocation5 + $0x8] sm:$0xf]
    %v102 = vld [vmem:[#allocation5 + $0xc] sm:$0xf]
    %v103 = vld [vmem:[#allocation5 + $0x10] sm:$0xf]
    %v104 = vld [vmem:[#allocation5 + $0x14] sm:$0xf]
    %v105 = vld [vmem:[#allocation5 + $0x18] sm:$0xf]
    %v106 = vld [vmem:[#allocation5 + $0x1c] sm:$0xf]
    %v107 = vld [vmem:[#allocation5 + $0x20] sm:$0xf]
    %v108 = vld [vmem:[#allocation5 + $0x24] sm:$0xf]
    %v109 = vld [vmem:[#allocation5 + $0x28] sm:$0xf]
    %v110 = vld [vmem:[#allocation5 + $0x2c] sm:$0xf]
    %v111 = vld [vmem:[#allocation5 + $0x30] sm:$0xf]
    %v112 = vld [vmem:[#allocation5 + $0x34] sm:$0xf]
    %v113 = vld [vmem:[#allocation5 + $0x38] sm:$0xf]
    %v114 = vld [vmem:[#allocation5 + $0x3c] sm:$0xf]
    %v115 = vld [vmem:[%s2] sm:$0x1]
    %v117 = vperm.slane %v115, 0
    %v135 = vunpack.c.l.b16 %v99
    %v136 = vunpack.c.l.b16 %v100
    %v137 = vunpack.c.l.b16 %v101
    %v138 = vunpack.c.l.b16 %v102
    %v139 = vunpack.c.l.b16 %v103
    %v140 = vunpack.c.l.b16 %v104
    %v141 = vunpack.c.l.b16 %v105
    %v142 = vunpack.c.l.b16 %v106
    %v143 = vunpack.c.l.b16 %v107
    %v144 = vunpack.c.l.b16 %v108
    %v145 = vunpack.c.l.b16 %v109
    %v146 = vunpack.c.l.b16 %v110
    %v147 = vunpack.c.l.b16 %v111
    %v148 = vunpack.c.l.b16 %v112
    %v149 = vunpack.c.l.b16 %v113
    %v150 = vunpack.c.l.b16 %v114
    %v151 = vpack.c.b16 %v136, %v135
    %v152 = vpack.c.b16 %v138, %v137
    %v153 = vpack.c.b16 %v140, %v139
    %v154 = vpack.c.b16 %v142, %v141
    %v155 = vpack.c.b16 %v144, %v143
    %v156 = vpack.c.b16 %v146, %v145
    %v157 = vpack.c.b16 %v148, %v147
    %v158 = vpack.c.b16 %v150, %v149
    %167 = vmatpush.bf16.msra.mxu0 %v158
    %168 = vmatpush.bf16.msra.mxu0 %v157
    %169 = vmatpush.bf16.msra.mxu0 %v156
    %170 = vmatpush.bf16.msra.mxu0 %v155
    %171 = vmatpush.bf16.msra.mxu0 %v154
    %172 = vmatpush.bf16.msra.mxu0 %v153
    %173 = vmatpush.bf16.msra.mxu0 %v152
    %174 = vmatpush.bf16.msra.mxu0 %v151
    %175 = vmatmul.bf16.gmra.mxu0 %v98
    %v176 = vpop.f32.mrf.mxu0
    %v177 = vadd.f32 %v117, %v176
    %v178 = vpop.f32.mrf.mxu0
    %179 = vdwg.mxu0
    %v180 = vadd.f32 %v177, %v97
    %181 = vadd.xlane.f32.xlu0 %v180
    %v182 = vpop.xlane.xlu0 %181
    %v183 = vmul.f32 %v182, 0.03125
    %v184 = vlaneseq
    %v185 = vand.u32 %v184, 127
    %vm186 = vcmp.lt.s32.totalorder %v185, 32
    %v187 = vsub.f32 %v180, %v183
    %v188 = vsel %vm186, 1, 0
    %vm189 = vcmp.eq.s32.totalorder %v188, 1
    %v190 = vsel %vm189, %v187, 0.0
    %v191 = vmul.f32 %v190, %v190
    %192 = vadd.xlane.f32.xlu0 %v191
    %v193 = vpop.xlane.xlu0 %192
    %v194 = vmul.f32 %v193, 0.03125
    %v195 = vadd.f32 %v194, 1e-05
    %v196 = vrsqrt.pop %v195
    %v197 = vmul.f32 %v196, %v195
    %v198 = vmul.f32 %v197, %v196
    %v199 = vmul.f32 0.5, %v198
    %v200 = vsub.f32 1.5, %v199
    %v201 = vmul.f32 %v196, %v200
    %vm202 = vweird.f32 %v195
    %vm203 = vweird.f32 %v196
    %vm204 = vmor %vm202, %vm203
    %v205 = vsel %vm204, %v196, %v201
    %v206 = vmul.f32 %v190, %v205
    %v207 = vld [vmem:[%s3] sm:$0x1]
    %v209 = vperm.slane %v207, 0
    %v211 = vmul.f32 %v206, %v209
    %v212 = vld [vmem:[%s4] sm:$0x1]
    %v214 = vperm.slane %v212, 0
    %v216 = vadd.f32 %v211, %v214
    %217 = vst [vmem:[#allocation11] sm:$0xff] %v216
    %v218 = vpack.c.bf16 %v216, %v216
    %v219 = vld [vmem:[#allocation7] sm:$0xf]
    %v220 = vld [vmem:[#allocation7 + $0x4] sm:$0xf]
    %v221 = vld [vmem:[#allocation7 + $0x8] sm:$0xf]
    %v222 = vld [vmem:[#allocation7 + $0xc] sm:$0xf]
    %v223 = vld [vmem:[#allocation7 + $0x10] sm:$0xf]
    %v224 = vld [vmem:[#allocation7 + $0x14] sm:$0xf]
    %v225 = vld [vmem:[#allocation7 + $0x18] sm:$0xf]
    %v226 = vld [vmem:[#allocation7 + $0x1c] sm:$0xf]
    %v227 = vld [vmem:[#allocation7 + $0x20] sm:$0xf]
    %v228 = vld [vmem:[#allocation7 + $0x24] sm:$0xf]
    %v229 = vld [vmem:[#allocation7 + $0x28] sm:$0xf]
    %v230 = vld [vmem:[#allocation7 + $0x2c] sm:$0xf]
    %v231 = vld [vmem:[#allocation7 + $0x30] sm:$0xf]
    %v232 = vld [vmem:[#allocation7 + $0x34] sm:$0xf]
    %v233 = vld [vmem:[#allocation7 + $0x38] sm:$0xf]
    %v234 = vld [vmem:[#allocation7 + $0x3c] sm:$0xf]
    %v235 = vld [vmem:[%s6] sm:$0x1]
    %v237 = vperm.slane %v235, 0
    %v255 = vunpack.c.l.b16 %v219
    %v256 = vunpack.c.l.b16 %v220
    %v257 = vunpack.c.l.b16 %v221
    %v258 = vunpack.c.l.b16 %v222
    %v259 = vunpack.c.l.b16 %v223
    %v260 = vunpack.c.l.b16 %v224
    %v261 = vunpack.c.l.b16 %v225
    %v262 = vunpack.c.l.b16 %v226
    %v263 = vunpack.c.l.b16 %v227
    %v264 = vunpack.c.l.b16 %v228
    %v265 = vunpack.c.l.b16 %v229
    %v266 = vunpack.c.l.b16 %v230
    %v267 = vunpack.c.l.b16 %v231
    %v268 = vunpack.c.l.b16 %v232
    %v269 = vunpack.c.l.b16 %v233
    %v270 = vunpack.c.l.b16 %v234
    %v271 = vpack.c.b16 %v256, %v255
    %v272 = vpack.c.b16 %v258, %v257
    %v273 = vpack.c.b16 %v260, %v259
    %v274 = vpack.c.b16 %v262, %v261
    %v275 = vpack.c.b16 %v264, %v263
    %v276 = vpack.c.b16 %v266, %v265
    %v277 = vpack.c.b16 %v268, %v267
    %v278 = vpack.c.b16 %v270, %v269
    %287 = vmatpush.bf16.msra.mxu0 %v278
    %288 = vmatpush.bf16.msra.mxu0 %v277
    %289 = vmatpush.bf16.msra.mxu0 %v276
    %290 = vmatpush.bf16.msra.mxu0 %v275
    %291 = vmatpush.bf16.msra.mxu0 %v274
    %292 = vmatpush.bf16.msra.mxu0 %v273
    %293 = vmatpush.bf16.msra.mxu0 %v272
    %294 = vmatpush.bf16.msra.mxu0 %v271
    %295 = vmatmul.bf16.gmra.mxu0 %v218
    %v296 = vpop.f32.mrf.mxu0
    %v297 = vadd.f32 %v237, %v296
    %v298 = vpop.f32.mrf.mxu0
    %299 = vdwg.mxu0
    %v300 = vmax.f32 %v297, 0.0
    %v301 = vpack.c.bf16 %v300, %v300
    %v302 = vld [vmem:[#allocation8] sm:$0xf]
    %v303 = vld [vmem:[#allocation8 + $0x4] sm:$0xf]
    %v304 = vld [vmem:[#allocation8 + $0x8] sm:$0xf]
    %v305 = vld [vmem:[#allocation8 + $0xc] sm:$0xf]
    %v306 = vld [vmem:[#allocation8 + $0x10] sm:$0xf]
    %v307 = vld [vmem:[#allocation8 + $0x14] sm:$0xf]
    %v308 = vld [vmem:[#allocation8 + $0x18] sm:$0xf]
    %v309 = vld [vmem:[#allocation8 + $0x1c] sm:$0xf]
    %v310 = vld [vmem:[#allocation8 + $0x20] sm:$0xf]
    %v311 = vld [vmem:[#allocation8 + $0x24] sm:$0xf]
    %v312 = vld [vmem:[#allocation8 + $0x28] sm:$0xf]
    %v313 = vld [vmem:[#allocation8 + $0x2c] sm:$0xf]
    %v314 = vld [vmem:[#allocation8 + $0x30] sm:$0xf]
    %v315 = vld [vmem:[#allocation8 + $0x34] sm:$0xf]
    %v316 = vld [vmem:[#allocation8 + $0x38] sm:$0xf]
    %v317 = vld [vmem:[#allocation8 + $0x3c] sm:$0xf]
    %v318 = vld [vmem:[%s8] sm:$0x1]
    %v320 = vperm.slane %v318, 0
    %v338 = vunpack.c.l.b16 %v302
    %v339 = vunpack.c.l.b16 %v303
    %v340 = vunpack.c.l.b16 %v304
    %v341 = vunpack.c.l.b16 %v305
    %v342 = vunpack.c.l.b16 %v306
    %v343 = vunpack.c.l.b16 %v307
    %v344 = vunpack.c.l.b16 %v308
    %v345 = vunpack.c.l.b16 %v309
    %v346 = vunpack.c.l.b16 %v310
    %v347 = vunpack.c.l.b16 %v311
    %v348 = vunpack.c.l.b16 %v312
    %v349 = vunpack.c.l.b16 %v313
    %v350 = vunpack.c.l.b16 %v314
    %v351 = vunpack.c.l.b16 %v315
    %v352 = vunpack.c.l.b16 %v316
    %v353 = vunpack.c.l.b16 %v317
    %v354 = vpack.c.b16 %v339, %v338
    %v355 = vpack.c.b16 %v341, %v340
    %v356 = vpack.c.b16 %v343, %v342
    %v357 = vpack.c.b16 %v345, %v344
    %v358 = vpack.c.b16 %v347, %v346
    %v359 = vpack.c.b16 %v349, %v348
    %v360 = vpack.c.b16 %v351, %v350
    %v361 = vpack.c.b16 %v353, %v352
    %370 = vmatpush.bf16.msra.mxu0 %v361
    %371 = vmatpush.bf16.msra.mxu0 %v360
    %372 = vmatpush.bf16.msra.mxu0 %v359
    %373 = vmatpush.bf16.msra.mxu0 %v358
    %374 = vmatpush.bf16.msra.mxu0 %v357
    %375 = vmatpush.bf16.msra.mxu0 %v356
    %376 = vmatpush.bf16.msra.mxu0 %v355
    %377 = vmatpush.bf16.msra.mxu0 %v354
    %378 = vmatmul.bf16.gmra.mxu0 %v301
    %v379 = vpop.f32.mrf.mxu0
    %v380 = vadd.f32 %v320, %v379
    %v381 = vpop.f32.mrf.mxu0
    %382 = vdwg.mxu0
    %v383 = vmax.f32 %v380, 0.0
    %384 = vst [vmem:[#allocation10] sm:$0xff] %v383
    // Predicated region
    $region54: #{tpu_custom_call.1} parent=1 // pred_check
      _
    $region55: #{tpu_custom_call.1} parent=1 // pred_check_branch
      %386 = sbr.rel (0) target = $region57
    $region56: #{tpu_custom_call.1} parent=1 // pred_region
      %388 = vsyncadd [#allocation4], 0
      %s390 = sshll.u32 [#allocation10], 4
      %s391 = int_to_ptr.vmem [resolvable:$true] %s390
      %s392 = sshll.u32 %s9, 4
      %s393 = int_to_ptr.hbm [resolvable:$true] %s392
      %395 = dma.vmem_to_hbm [thread:$0]  %s391, 128, %s393, [#allocation4]
    $region57: #{tpu_custom_call.1} parent=1 // pred_fallthru
      _
    // Predicated region
    $region58: #{tpu_custom_call.1} parent=1 // pred_check
      _
    $region59: #{tpu_custom_call.1} parent=1 // pred_check_branch
      %397 = sbr.rel (0) target = $region61
    $region60: #{tpu_custom_call.1} parent=1 // pred_region
      %399 = vsyncadd [#allocation12], 0
      %s401 = sshll.u32 [#allocation11], 4
      %s402 = int_to_ptr.vmem [resolvable:$true] %s401
      %s403 = sshll.u32 %s10, 4
      %s404 = int_to_ptr.hbm [resolvable:$true] %s403
      %406 = dma.vmem_to_hbm [thread:$0]  %s402, 128, %s404, [#allocation12]
    $region61: #{tpu_custom_call.1} parent=1 // pred_fallthru
      _
    // Predicated region
    $region62: #{tpu_custom_call.1} parent=1 // pred_check
      _
    $region63: #{tpu_custom_call.1} parent=1 // pred_check_branch
      %408 = sbr.rel (0) target = $region65
    $region64: #{tpu_custom_call.1} parent=1 // pred_region
      %410 = dma.done [#allocation4], 128
    $region65: #{tpu_custom_call.1} parent=1 // pred_fallthru
      _
    // Predicated region
    $region66: #{tpu_custom_call.1} parent=1 // pred_check
      _
    $region67: #{tpu_custom_call.1} parent=1 // pred_check_branch
      %412 = sbr.rel (0) target = $region69
    $region68: #{tpu_custom_call.1} parent=1 // pred_region
      %414 = dma.done [#allocation12], 128
    $region69: #{tpu_custom_call.1} parent=1 // pred_fallthru
      _
    %415 = vsyncpa [#allocation3], 1
    %416 = vsyncpa [#allocation6], 1
    %417 = vsyncpa [#allocation9], 1
    %418 = vsyncpa [#allocation4], 1
    %419 = vsyncpa [#allocation12], 1

</llo_original>
